<compile_context>
chip_gen: v6e
topology: v6e:2x2x1
jax: 0.10.0
libtpu: 0.0.40
codegen_flags: <defaults>
</compile_context>

<pallas_src>
import functools
import math

import jax
import jax.numpy as jnp
from jax.experimental import pallas as pl
from jax.experimental.pallas import tpu as pltpu


# ----------------------------------------------------------------------------
# Per-chip constants & tile selection helpers
# ----------------------------------------------------------------------------
def _chip_constants():
    """Bigger tiles / VMEM budget on v5e/v6e (128 MiB VMEM); conservative on v7x."""
    try:
        info = pltpu.get_tpu_info()
        vmem = getattr(info, "vmem_capacity_bytes", 0) or 0
        if vmem >= 100 * 1024 * 1024:
            return 1024, 64 * 1024 * 1024
    except Exception:
        pass
    return 512, 32 * 1024 * 1024


_MAX_TM, _VMEM_LIMIT = _chip_constants()
_MAX_TK = 2048
_MAX_TN = 256


def _round_up(x, m):
    return (x + m - 1) // m * m


def _pick_tile(dim, align, max_tile):
    """Return (tile, padded_dim): tile*n >= dim, tile <= max_tile, minimal waste."""
    d0 = _round_up(dim, align)
    n = max(1, -(-d0 // max_tile))
    t = _round_up(-(-d0 // n), align)
    return t, t * n


def _pick_tile_m(dim, max_tile):
    """M tile: like _pick_tile, but split into >=2 blocks when big enough so both
    v7x TensorCores get a 'parallel' block (harmless on single-TC chips)."""
    d0 = _round_up(dim, 16)
    n = max(1, -(-d0 // max_tile))
    if n == 1 and d0 >= 256:
        n = 2
    t = _round_up(-(-d0 // n), 16)
    return t, t * n


# ----------------------------------------------------------------------------
# Pallas matmul kernels:  out(bf16) = act(A(bf16) @ W(bf16) + bias [+ residual])
#   f32 accumulation + f32 epilogue; scratch accumulator skipped when nk == 1.
# ----------------------------------------------------------------------------
def _make_mm_kernel(act, has_res, single_k):
    def epilogue(acc, b, r):
        acc = acc + b
        if r is not None:
            acc = acc + r.astype(jnp.float32)
        if act == "relu":
            acc = jnp.maximum(acc, 0.0)
        elif act == "tanh":
            acc = jnp.tanh(acc)
        return acc

    if single_k:
        if has_res:
            def kernel(a_ref, w_ref, b_ref, r_ref, o_ref):
                acc = jnp.dot(a_ref[...], w_ref[...],
                              preferred_element_type=jnp.float32)
                o_ref[...] = epilogue(acc, b_ref[...], r_ref[...]).astype(o_ref.dtype)
        else:
            def kernel(a_ref, w_ref, b_ref, o_ref):
                acc = jnp.dot(a_ref[...], w_ref[...],
                              preferred_element_type=jnp.float32)
                o_ref[...] = epilogue(acc, b_ref[...], None).astype(o_ref.dtype)
        return kernel

    if has_res:
        def kernel(a_ref, w_ref, b_ref, r_ref, o_ref, acc_ref):
            k = pl.program_id(2)

            @pl.when(k == 0)
            def _():
                acc_ref[...] = jnp.zeros_like(acc_ref)

            acc_ref[...] += jnp.dot(a_ref[...], w_ref[...],
                                    preferred_element_type=jnp.float32)

            @pl.when(k == pl.num_programs(2) - 1)
            def _():
                o_ref[...] = epilogue(acc_ref[...], b_ref[...],
                                      r_ref[...]).astype(o_ref.dtype)
    else:
        def kernel(a_ref, w_ref, b_ref, o_ref, acc_ref):
            k = pl.program_id(2)

            @pl.when(k == 0)
            def _():
                acc_ref[...] = jnp.zeros_like(acc_ref)

            acc_ref[...] += jnp.dot(a_ref[...], w_ref[...],
                                    preferred_element_type=jnp.float32)

            @pl.when(k == pl.num_programs(2) - 1)
            def _():
                o_ref[...] = epilogue(acc_ref[...], b_ref[...],
                                      None).astype(o_ref.dtype)
    return kernel


@functools.lru_cache(maxsize=None)
def _get_mm_call(Mp, Kp, Np, tm, tk, tn, act, has_res):
    nm, nn, nk = Mp // tm, Np // tn, Kp // tk
    kernel = _make_mm_kernel(act, has_res, nk == 1)
    in_specs = [
        pl.BlockSpec((tm, tk), lambda i, j, k: (i, k)),   # A tile (bf16)
        pl.BlockSpec((tk, tn), lambda i, j, k: (k, j)),   # W tile (bf16)
        pl.BlockSpec((1, tn), lambda i, j, k: (0, j)),    # bias (f32)
    ]
    if has_res:
        in_specs.append(pl.BlockSpec((tm, tn), lambda i, j, k: (i, j)))  # residual
    scratch = [] if nk == 1 else [pltpu.VMEM((tm, tn), jnp.float32)]
    fn = pl.pallas_call(
        kernel,
        grid=(nm, nn, nk),
        in_specs=in_specs,
        out_specs=pl.BlockSpec((tm, tn), lambda i, j, k: (i, j)),
        out_shape=jax.ShapeDtypeStruct((Mp, Np), jnp.bfloat16),
        scratch_shapes=scratch,
        compiler_params=pltpu.CompilerParams(
            dimension_semantics=("parallel", "parallel", "arbitrary"),
            vmem_limit_bytes=_VMEM_LIMIT),
    )
    return jax.jit(fn)


def matmul_bias(a, wp, act="none", residual=None):
    """a: (M, K) bf16/f32.  wp: prepped weight dict (padded bf16 W, padded f32 bias)."""
    M, K = a.shape
    Kp, Np = wp["w2"].shape
    N = wp["n"]
    tk, tn = wp["tk"], wp["tn"]
    tm, Mp = _pick_tile_m(M, _MAX_TM)

    a_p = a.astype(jnp.bfloat16)
    if (Mp, Kp) != (M, K):
        a_p = jnp.pad(a_p, ((0, Mp - M), (0, Kp - K)))

    args = [a_p, wp["w2"], wp["b"]]
    if residual is not None:
        r = residual.astype(jnp.bfloat16)
        if (Mp, Np) != (M, N):
            r = jnp.pad(r, ((0, Mp - M), (0, Np - N)))
        args.append(r)

    fn = _get_mm_call(Mp, Kp, Np, tm, tk, tn, act, residual is not None)
    out = fn(*args)
    if (Mp, Np) != (M, N):
        out = out[:M, :N]
    return out


# ----------------------------------------------------------------------------
# RankingCorrelation Pallas kernel
#   grid (B, query tiles, reference tiles); the blurred reference is streamed
#   over the last (reduction) axis with a running max / first-argmax in VMEM
#   scratch; output is int32 argmax indices (gather of `ref` happens outside).
# ----------------------------------------------------------------------------
def _rank_kernel(cur_ref, rbn_ref, idx_ref, m_sc, i_sc, *, tlr, l_true):
    r = pl.program_id(2)

    @pl.when(r == 0)
    def _():
        m_sc[...] = jnp.full_like(m_sc, -3.0)
        i_sc[...] = jnp.zeros_like(i_sc)

    cur = cur_ref[0].astype(jnp.float32)                        # (tlq, K)
    inv_c = jax.lax.rsqrt(jnp.maximum(
        jnp.sum(cur * cur, axis=1, keepdims=True), 1e-24))
    cur_n = cur * inv_c

    rbn = rbn_ref[0]                                            # (tlr, K) f32
    # rel[j, i] = cos(current patch j, blurred-reference patch (r*tlr + i))
    rel = jax.lax.dot_general(cur_n, rbn, (((1,), (1,)), ((), ())),
                              preferred_element_type=jnp.float32)  # (tlq, tlr)
    cols = r * tlr + jax.lax.broadcasted_iota(jnp.int32, rel.shape, 1)
    rel = jnp.where(cols < l_true, rel, -2.0)                   # mask padded cols

    tile_max = jnp.max(rel, axis=1, keepdims=True)              # (tlq, 1)
    cand = jnp.where(rel >= tile_max, cols, jnp.int32(2 ** 30))
    tile_idx = jnp.min(cand, axis=1, keepdims=True)             # first argmax in tile

    better = tile_max > m_sc[...]                               # strict > keeps first
    i_sc[...] = jnp.where(better, tile_idx, i_sc[...])
    m_sc[...] = jnp.where(better, tile_max, m_sc[...])

    @pl.when(r == pl.num_programs(2) - 1)
    def _():
        idx_ref[0] = i_sc[...]


@functools.lru_cache(maxsize=None)
def _get_rank_call(B, Lqp, Lrp, K, tlq, tlr, l_true):
    nq, nr = Lqp // tlq, Lrp // tlr
    kernel = functools.partial(_rank_kernel, tlr=tlr, l_true=l_true)
    fn = pl.pallas_call(
        kernel,
        grid=(B, nq, nr),
        in_specs=[pl.BlockSpec((1, tlq, K), lambda b, q, r: (b, q, 0)),   # cur (bf16)
                  pl.BlockSpec((1, tlr, K), lambda b, q, r: (b, r, 0))],  # rbn (f32)
        out_specs=pl.BlockSpec((1, tlq, 1), lambda b, q, r: (b, q, 0)),
        out_shape=jax.ShapeDtypeStruct((B, Lqp, 1), jnp.int32),
        scratch_shapes=[pltpu.VMEM((tlq, 1), jnp.float32),
                        pltpu.VMEM((tlq, 1), jnp.int32)],
        compiler_params=pltpu.CompilerParams(
            dimension_semantics=("parallel", "parallel", "arbitrary"),
            vmem_limit_bytes=_VMEM_LIMIT),
    )
    return jax.jit(fn)


# ----------------------------------------------------------------------------
# Conv / ConvTranspose via NHWC im2col + Pallas matmul (bf16 activations)
# ----------------------------------------------------------------------------
def im2col_nhwc(x, k, stride, pad):
    """x: (B, H, W, C) -> (B*Ho*Wo, k*k*C) with (ky, kx, c) ordering."""
    B, H, W, C = x.shape
    xp = jnp.pad(x, ((0, 0), (pad, pad), (pad, pad), (0, 0))) if pad else x
    Ho = (H + 2 * pad - k) // stride + 1
    Wo = (W + 2 * pad - k) // stride + 1
    cols = [xp[:, ky: ky + stride * (Ho - 1) + 1: stride,
               kx: kx + stride * (Wo - 1) + 1: stride, :]
            for ky in range(k) for kx in range(k)]
    A = cols[0] if len(cols) == 1 else jnp.concatenate(cols, axis=-1)
    return A.reshape(B * Ho * Wo, k * k * C), (B, Ho, Wo)


def conv2d(x, p, stride=1, pad=1, act="none", residual=None):
    A, (B, Ho, Wo) = im2col_nhwc(x, p["k"], stride, pad)
    res2 = residual.reshape(B * Ho * Wo, p["n"]) if residual is not None else None
    o2 = matmul_bias(A, p, act=act, residual=res2)
    return o2.reshape(B, Ho, Wo, p["n"])


def conv_transpose2d(x, p, act="none"):
    """ConvTranspose2d(k=3, s=2, p=1, op=1): 4 sub-pixel phases packed into ONE GEMM."""
    B, H, W, C = x.shape
    xs_w = jnp.pad(x, ((0, 0), (0, 0), (0, 1), (0, 0)))[:, :, 1:, :]      # x[m, n+1]
    xs_h = jnp.pad(x, ((0, 0), (0, 1), (0, 0), (0, 0)))[:, 1:, :, :]      # x[m+1, n]
    xs_hw = jnp.pad(x, ((0, 0), (0, 1), (0, 1), (0, 0)))[:, 1:, 1:, :]    # x[m+1, n+1]
    A = jnp.concatenate([x, xs_w, xs_h, xs_hw], axis=-1).reshape(B * H * W, 4 * C)

    y2 = matmul_bias(A, p, act=act)                  # (B*H*W, 4*Cout) bf16
    Cout = p["cout"]
    y = y2.reshape(B, H, W, 2, 2, Cout)              # (..., pu, pv, Cout)
    y = jnp.transpose(y, (0, 1, 3, 2, 4, 5)).reshape(B, 2 * H, 2 * W, Cout)
    return y


# ----------------------------------------------------------------------------
# ResNet pieces (BN folded into conv affine)
# ----------------------------------------------------------------------------
def basic_block(x, p):
    s = p["stride"]
    out = conv2d(x, p["conv1"], stride=s, pad=1, act="relu")
    if "down" in p:
        identity = conv2d(x, p["down"], stride=s, pad=0, act="none")
    else:
        identity = x
    # conv2 + bias + identity + ReLU fused in the Pallas epilogue.
    return conv2d(out, p["conv2"], stride=1, pad=1, act="relu", residual=identity)


def run_layer(x, blocks):
    for bp in blocks:
        x = basic_block(x, bp)
    return x


def encoder(x, P):
    f0 = conv2d(x, P["conv1"], stride=2, pad=3, act="relu")
    f1 = run_layer(f0, P["layer1"])
    f2 = run_layer(f1, P["layer2"])
    f3 = run_layer(f2, P["layer3"])
    return f1, f2, f3


# ----------------------------------------------------------------------------
# RankingCorrelationModule (unfold / rank kernel / gather / fold, NHWC)
# ----------------------------------------------------------------------------
def unfold3_nhwc(x):
    B, H, W, C = x.shape
    xp = jnp.pad(x, ((0, 0), (1, 1), (1, 1), (0, 0)))
    cols = [xp[:, ky:ky + H, kx:kx + W, :] for ky in range(3) for kx in range(3)]
    u = jnp.concatenate(cols, axis=-1)                 # (B, H, W, 9C), (ky,kx,c)
    return u.reshape(B, H * W, 9 * C)


def fold3_nhwc(u, H, W, C):
    """F.fold(k=3, pad=1) as a gather-sum (pad + 9 shifted slices)."""
    B = u.shape[0]
    pat = u.reshape(B, H, W, 3, 3, C)
    patp = jnp.pad(pat, ((0, 0), (1, 1), (1, 1), (0, 0), (0, 0), (0, 0)))
    out = None
    for ky in range(3):
        for kx in range(3):
            sl = patp[:, 2 - ky:2 - ky + H, 2 - kx:2 - kx + W, ky, kx, :]
            out = sl if out is None else out + sl
    return out


def ranking_correlation(fc, fr, frb):
    B, H, W, C = fc.shape
    cur = unfold3_nhwc(fc)                               # (B, L, 9C) bf16
    ref = unfold3_nhwc(fr)                               # (B, L, 9C) bf16
    rb = unfold3_nhwc(frb).astype(jnp.float32)
    # Pre-normalize the blurred reference once, outside the kernel (f32 exact).
    rbn = rb * jax.lax.rsqrt(jnp.maximum(
        jnp.sum(rb * rb, axis=2, keepdims=True), 1e-24))

    L, K = cur.shape[1], cur.shape[2]
    tl, Lp = _pick_tile(L, 16, 256)
    if Lp != L:
        padq = ((0, 0), (0, Lp - L), (0, 0))
        cur = jnp.pad(cur, padq)
        rbn = jnp.pad(rbn, padq)

    idx = _get_rank_call(B, Lp, Lp, K, tl, tl, L)(cur, rbn)   # (B, Lp, 1) int32
    idx = idx[:, :L, 0]
    gathered = jax.vmap(lambda r, i: jnp.take(r, i, axis=0))(ref, idx)  # (B, L, 9C)
    return fc + fold3_nhwc(gathered, H, W, C)


# ----------------------------------------------------------------------------
# Decoder
# ----------------------------------------------------------------------------
def decode(P, cat3, f2, f1, final_act="none"):
    d3 = run_layer(conv2d(cat3, P["ct3"], stride=1, pad=1), P["dlayer3"])
    u3 = conv_transpose2d(d3, P["up3"])
    d2 = run_layer(conv2d(jnp.concatenate([u3, f2], axis=-1), P["ct2"],
                          stride=1, pad=1), P["dlayer2"])
    u2 = conv_transpose2d(d2, P["up2"])
    d1 = run_layer(conv2d(jnp.concatenate([u2, f1], axis=-1), P["ct1"],
                          stride=1, pad=1), P["dlayer1"])
    return conv_transpose2d(d1, P["up1"], act=final_act)


# ----------------------------------------------------------------------------
# Full forward (NCHW at the boundary, NHWC bf16 internally).  All shared-weight
# encoder / ranking / decoder invocations are batched along the leading axis.
# ----------------------------------------------------------------------------
def forward(params, input_current, real_current, real_current_blur):
    x_in = jnp.transpose(input_current, (0, 2, 3, 1)).astype(jnp.bfloat16)
    x_re = jnp.transpose(real_current, (0, 2, 3, 1)).astype(jnp.bfloat16)
    x_bl = jnp.transpose(real_current_blur, (0, 2, 3, 1)).astype(jnp.bfloat16)
    Pv1, Pv2, Pv3 = params["v1"], params["v2"], params["v3"]
    B, H, W, _ = x_in.shape
    h2, w2 = H // 2, W // 2

    def quads(x):  # LU, RU, LD, RD
        return [x[:, :h2, :w2, :], x[:, :h2, w2:, :],
                x[:, h2:, :w2, :], x[:, h2:, w2:, :]]

    # ---- v3: 4 quadrants x {input, real, blur} in ONE batched encoder call ----
    batch_v3 = jnp.concatenate(quads(x_in) + quads(x_re) + quads(x_bl), axis=0)
    f1, f2, f3 = encoder(batch_v3, Pv3)
    if3, rf3, bf3 = f3[:4 * B], f3[4 * B:8 * B], f3[8 * B:]
    if1, if2 = f1[:4 * B], f2[:4 * B]

    ranked3 = ranking_correlation(if3, rf3, bf3)                  # (4B, h/8, w/8, 256)
    sub3 = decode(Pv3, jnp.concatenate([ranked3, if3], axis=-1), if2, if1)

    subs = [sub3[k * B:(k + 1) * B] for k in range(4)]            # LU, RU, LD, RD
    rks = [ranked3[k * B:(k + 1) * B] for k in range(4)]
    sub_comb_L = jnp.concatenate([subs[0], subs[2]], axis=1)
    sub_comb_R = jnp.concatenate([subs[1], subs[3]], axis=1)
    comb_v3_L = jnp.concatenate([rks[0], rks[2]], axis=1)
    comb_v3_R = jnp.concatenate([rks[1], rks[3]], axis=1)

    # ---- v2: L / R halves, 6 encoder calls -> 1 batched call ----
    inL, inR = x_in[:, :, :w2, :], x_in[:, :, w2:, :]
    reL, reR = x_re[:, :, :w2, :], x_re[:, :, w2:, :]
    blL, blR = x_bl[:, :, :w2, :], x_bl[:, :, w2:, :]
    batch_v2 = jnp.concatenate(
        [inL + sub_comb_L, inR + sub_comb_R, reL, reR, blL, blR], axis=0)
    f1, f2, f3 = encoder(batch_v2, Pv2)
    if3, rf3, bf3 = f3[:2 * B], f3[2 * B:4 * B], f3[4 * B:]
    if1, if2 = f1[:2 * B], f2[:2 * B]

    ranked2 = ranking_correlation(if3, rf3, bf3)                  # (2B, ...)
    comb3 = jnp.concatenate([comb_v3_L, comb_v3_R], axis=0)       # aligned L;R
    sub2 = decode(Pv2, jnp.concatenate([ranked2, comb3, if3], axis=-1), if2, if1)

    sub_feature = jnp.concatenate([sub2[:B], sub2[B:]], axis=2)   # L | R along W
    comb_v2 = jnp.concatenate([ranked2[:B], ranked2[B:]], axis=2)

    # ---- v1: full image, 3 encoder calls -> 1 batched call ----
    batch_v1 = jnp.concatenate([x_in + sub_feature, x_re, x_bl], axis=0)
    f1, f2, f3 = encoder(batch_v1, Pv1)
    if3, rf3, bf3 = f3[:B], f3[B:2 * B], f3[2 * B:]
    if1, if2 = f1[:B], f2[:B]

    ranked1 = ranking_correlation(if3, rf3, bf3)
    out = decode(Pv1, jnp.concatenate([ranked1, comb_v2, if3], axis=-1), if2, if1,
                 final_act="tanh")
    return jnp.transpose(out.astype(jnp.float32), (0, 3, 1, 2))   # back to NCHW f32


# ----------------------------------------------------------------------------
# Deterministic parameter construction (weights prepped once: reshape/pack/pad/bf16)
# ----------------------------------------------------------------------------
class KeyGen:
    def __init__(self, seed=0):
        self._key = jax.random.PRNGKey(seed)
        self._n = 0

    def __call__(self):
        self._n += 1
        return jax.random.fold_in(self._key, self._n)


def _normal(key, shape, std):
    return std * jax.random.normal(key, shape, dtype=jnp.float32)


def _prep_matmul_weight(Wm, b):
    """Wm: (K, N) f32, b: (N,) f32 -> padded bf16 weight / f32 bias dict."""
    K, n = Wm.shape
    tk, Kp = _pick_tile(K, 128, _MAX_TK)
    tn, Np = _pick_tile(n, 128, _MAX_TN)
    w2 = jnp.pad(Wm, ((0, Kp - K), (0, Np - n))).astype(jnp.bfloat16)
    bp = jnp.pad(b.astype(jnp.float32), (0, Np - n)).reshape(1, Np)
    return {"w2": w2, "b": bp, "n": n, "tk": tk, "tn": tn}


def prep_conv(w, b):
    """w: (Cout, Cin, k, k) -> matmul weight with (ky, kx, c) K ordering."""
    cout, cin, k, _ = w.shape
    Wm = jnp.transpose(w, (2, 3, 1, 0)).reshape(k * k * cin, cout)
    d = _prep_matmul_weight(Wm, b)
    d["k"] = k
    return d


def prep_convT(wt, b):
    """wt: (Cin, Cout, 3, 3) -> packed 4-phase weight (K=4*Cin, N=4*Cout)."""
    cin, cout = wt.shape[0], wt.shape[1]
    Z = jnp.zeros((cin, cout), jnp.float32)
    row_x = jnp.concatenate([wt[:, :, 1, 1], wt[:, :, 1, 2],
                             wt[:, :, 2, 1], wt[:, :, 2, 2]], axis=1)
    row_w = jnp.concatenate([Z, wt[:, :, 1, 0], Z, wt[:, :, 2, 0]], axis=1)
    row_h = jnp.concatenate([Z, Z, wt[:, :, 0, 1], wt[:, :, 0, 2]], axis=1)
    row_hw = jnp.concatenate([Z, Z, Z, wt[:, :, 0, 0]], axis=1)
    Wm = jnp.concatenate([row_x, row_w, row_h, row_hw], axis=0)   # (4Cin, 4Cout)
    d = _prep_matmul_weight(Wm, jnp.tile(b, 4))
    d["cout"] = cout
    return d


def conv_params(kg, cout, cin, k, bias=True):
    std = math.sqrt(2.0 / (cin * k * k))
    w = _normal(kg(), (cout, cin, k, k), std)
    b = _normal(kg(), (cout,), 0.01) if bias else jnp.zeros((cout,), jnp.float32)
    return prep_conv(w, b)


def convT_params(kg, cin, cout, k=3):
    std = math.sqrt(2.0 / (cin * k * k))
    wt = _normal(kg(), (cin, cout, k, k), std)
    b = _normal(kg(), (cout,), 0.01)
    return prep_convT(wt, b)


def block_params(kg, cin, cout, stride):
    p = {"conv1": conv_params(kg, cout, cin, 3),
         "conv2": conv_params(kg, cout, cout, 3),
         "stride": stride}
    if stride != 1 or cin != cout:
        p["down"] = conv_params(kg, cout, cin, 1)
    return p


def layer_params(kg, cin, cout, nblocks, stride):
    blocks = [block_params(kg, cin, cout, stride)]
    for _ in range(nblocks - 1):
        blocks.append(block_params(kg, cout, cout, 1))
    return blocks


def branch_params(kg, ct3_in):
    return {
        "conv1": conv_params(kg, 64, 3, 7, bias=False),
        "layer1": layer_params(kg, 64, 64, 3, 1),
        "layer2": layer_params(kg, 64, 128, 3, 2),
        "layer3": layer_params(kg, 128, 256, 3, 2),
        # TODO(synk): decoder layer6/7/8 depth unknown; 1 BasicBlock each assumed.
        "dlayer3": layer_params(kg, 256, 256, 1, 1),
        "dlayer2": layer_params(kg, 128, 128, 1, 1),
        "dlayer1": layer_params(kg, 64, 64, 1, 1),
        "up3": convT_params(kg, 256, 128),
        "up2": convT_params(kg, 128, 64),
        "up1": convT_params(kg, 64, 3),
        "ct3": conv_params(kg, 256, ct3_in, 3),
        "ct2": conv_params(kg, 128, 256, 3),
        "ct1": conv_params(kg, 64, 128, 3),
    }


def init_params(seed=0):
    kg = KeyGen(seed)
    return {"v1": branch_params(kg, ct3_in=768),
            "v2": branch_params(kg, ct3_in=768),
            "v3": branch_params(kg, ct3_in=512)}


# ----------------------------------------------------------------------------
if __name__ == "__main__":
    B, C, H, W = 1, 3, 32, 32
    k1, k2, k3 = jax.random.split(jax.random.PRNGKey(0), 3)
    input_current = jax.random.normal(k1, (B, C, H, W), dtype=jnp.float32)
    real_current = jax.random.normal(k2, (B, C, H, W), dtype=jnp.float32)
    real_current_blur = jax.random.normal(k3, (B, C, H, W), dtype=jnp.float32)

    params = init_params(seed=0)
    out = forward(params, input_current, real_current, real_current_blur)
    out = jax.block_until_ready(out)

    assert out.shape == (B, 3, H, W), out.shape
    assert bool(jnp.all(jnp.isfinite(out)))
    print("KERNEL_OK")
</pallas_src>

<mosaic_0001>
module attributes {stable_mosaic.version = 11 : i64} {
  func.func @kernel(%arg0: i32, %arg1: i32, %arg2: i32, %arg3: memref<384x256xbf16, #tpu.memory_space<vmem>>, %arg4: memref<256x128xbf16, #tpu.memory_space<vmem>>, %arg5: memref<1x128xf32, #tpu.memory_space<vmem>>, %arg6: memref<384x128xbf16, #tpu.memory_space<vmem>>) attributes {dimension_semantics = [#tpu.dimension_semantics<parallel>, #tpu.dimension_semantics<parallel>, #tpu.dimension_semantics<arbitrary>], iteration_bounds = array<i64: 2, 1, 1>, scalar_prefetch = 0 : i64, scratch_operands = 0 : i64, tpu.core_type = #tpu.core_type<tc>, window_params = [{transform_indices = @transform_0, window_bounds = array<i64: 384, 256>}, {transform_indices = @transform_1, window_bounds = array<i64: 256, 128>}, {transform_indices = @transform_2, window_bounds = array<i64: 1, 128>}, {transform_indices = @transform_3, window_bounds = array<i64: 384, 128>}]} {
    %c0 = arith.constant 0 : index
    %c0_0 = arith.constant 0 : index
    %0 = vector.load %arg3[%c0, %c0_0] : memref<384x256xbf16, #tpu.memory_space<vmem>>, vector<384x256xbf16>
    %c0_1 = arith.constant 0 : index
    %c0_2 = arith.constant 0 : index
    %1 = vector.load %arg4[%c0_1, %c0_2] : memref<256x128xbf16, #tpu.memory_space<vmem>>, vector<256x128xbf16>
    %cst = arith.constant dense<0.000000e+00> : vector<384x128xf32>
    %2 = tpu.matmul %0, %1, %cst {dimension_numbers = #tpu.dot_dimension_numbers<[1], [0], [0], [1], [0, 0, 1, 1], [], []>} : vector<384x256xbf16>, vector<256x128xbf16>, vector<384x128xf32> -> vector<384x128xf32>
    %c0_3 = arith.constant 0 : index
    %c0_4 = arith.constant 0 : index
    %3 = vector.load %arg5[%c0_3, %c0_4] : memref<1x128xf32, #tpu.memory_space<vmem>>, vector<1x128xf32>
    %4 = vector.broadcast %3 : vector<1x128xf32> to vector<384x128xf32>
    %5 = arith.addf %2, %4 : vector<384x128xf32>
    %cst_5 = arith.constant 0.000000e+00 : f32
    %6 = vector.broadcast %cst_5 : f32 to vector<384x128xf32>
    %7 = arith.maximumf %5, %6 : vector<384x128xf32>
    %8 = arith.truncf %7 : vector<384x128xf32> to vector<384x128xbf16>
    %c0_6 = arith.constant 0 : index
    %c0_7 = arith.constant 0 : index
    %9 = vector.load %arg6[%c0_6, %c0_7] : memref<384x128xbf16, #tpu.memory_space<vmem>>, vector<384x128xbf16>
    tpu.vector_store %arg6[%c0_6, %c0_7], %8 {strides = array<i32>} : memref<384x128xbf16, #tpu.memory_space<vmem>>, vector<384x128xbf16>,
    return
  }
  func.func @transform_0(%arg0: i32, %arg1: i32, %arg2: i32) -> (i32, i32) {
    %c0_i32 = arith.constant 0 : i32
    return %arg0, %arg2 : i32, i32
  }
  func.func @transform_1(%arg0: i32, %arg1: i32, %arg2: i32) -> (i32, i32) {
    %c0_i32 = arith.constant 0 : i32
    return %arg2, %arg1 : i32, i32
  }
  func.func @transform_2(%arg0: i32, %arg1: i32, %arg2: i32) -> (i32, i32) {
    %c0_i32 = arith.constant 0 : i32
    %c0_i32_0 = arith.constant 0 : i32
    return %c0_i32, %arg1 : i32, i32
  }
  func.func @transform_3(%arg0: i32, %arg1: i32, %arg2: i32) -> (i32, i32) {
    %c0_i32 = arith.constant 0 : i32
    return %arg0, %arg1 : i32, i32
  }
}

</mosaic_0001>

<llo_original>
// kernel: tpu_custom_call.1
$region0: #{tpu_custom_call.1}
  #allocation0 [shape = 'u32[]', space=smem, size = 0x4, offset = 0x4, fixed_abs, tag = 'smem constant byte address 0x4 - core index']
  #allocation1 [shape = 'u32[144,128]{1,0:T(1,128)}', space=vmem, size = 0x12000, scoped, tag = 'internal scratch']
  %s0 = inlined_call_operand.hbm [shape: bf16[768,256], index: 0, kind: input, shape index: {}]
  %s1 = inlined_call_operand.hbm [shape: bf16[256,128], index: 1, kind: input, shape index: {}]
  %s2 = inlined_call_operand.vmem [shape: f32[1,128], index: 2, kind: input, shape index: {}]
  %s3 = inlined_call_operand.hbm [shape: bf16[768,128], index: 3, kind: output, shape index: {}]
  %s4 = sld [smem:[#allocation0]]
  $region53: #{tpu_custom_call.1} parent=0
    _
  %s6 = ssub.s32 1, %s4
  %s7 = scalar_select 0, %s6, %s4
  $region1: #{tpu_custom_call.1} parent=0
    #allocation2 [shape = 'u8[393216]{0}', space=vmem, size = 0x60000, scoped, tag = 'input window, operand 0']
    #allocation3 [shape = 's32[2]{0}', space=sflag, size = 0x8, scoped, tag = 'scoped memory for tpu_custom_call.1']
    #allocation4 [shape = 's32[2]{0}', space=sflag, size = 0x8, scoped, tag = 'scoped memory for tpu_custom_call.1']
    #allocation5 [shape = 'u8[65536]{0}', space=vmem, size = 0x10000, scoped, tag = 'input window, operand 1, single buffered']
    #allocation6 [shape = 's32[1]{0}', space=sflag, size = 0x4, scoped, tag = 'scoped memory for tpu_custom_call.1']
    #allocation7 [shape = 'u8[196608]{0}', space=vmem, size = 0x30000, scoped, tag = 'output window, operand 0']
    %8 = vsyncpa [#allocation3], 0
    %s9 = scalar_lea.sflag [#allocation3], 1
    %10 = vsyncpa %s9, 0
    %11 = vsyncpa [#allocation6], 0
    %12 = vsyncpa [#allocation4], 0
    %s13 = scalar_lea.sflag [#allocation4], 1
    %14 = vsyncpa %s13, 0
    loop: start=0, step=1, limit=4
    $region2: #{tpu_custom_call.1} parent=1 // loop_pre_header
      _
    $region3: #{tpu_custom_call.1} parent=1 // loop_header
      %s16 = sphi 0, %s20
      %p17 = scmp.ge.s32.totalorder %s16, 4
      %s23 = sphi 0, %s42
      %s24 = sphi 0, %s38
      %s25 = sphi 0, %s34
      %s26 = sphi 0, %s23
      %s27 = sphi 0, %s24
      %s28 = sphi 0, %s25
      %s29 = sphi 0, %s26
      %s30 = sphi 0, %s27
      %s31 = sphi 0, %s28
      %s47 = sphi 0, %s49
      %s50 = sphi 0, %s47
      %s51 = sphi 0, %s50
      %s67 = sphi 0, %s51
      %s75 = sphi 0, %s77
      %s78 = sphi 0, %s75
      %s79 = sphi 0, %s78
      %s95 = sphi 0, %s79
      %s101 = sphi 0, %s103
      %s104 = sphi 0, %s101
      %s105 = sphi 0, %s104
      %s121 = sphi 0, %s105
      %s129 = sphi 0, %s131
      %s132 = sphi 0, %s129
      %s133 = sphi 0, %s132
      %s149 = sphi 0, %s133
    $region4: #{tpu_custom_call.1} parent=1 // loop_header_branch
      %19 = sbr.rel (%p17) target = $region8
    $region5: #{tpu_custom_call.1} parent=1 // loop_body
      %s21 = ssub.s32 %s16, 1
      %s22 = ssub.s32 %s16, 2
      %s32 = sadd.s32 1, %s25
      %p33 = scmp.ge.s32.totalorder %s32, 1
      %s34 = scalar_select %p33, 0, %s32
      %s35 = sadd.s32 1, %s24
      %s36 = scalar_select %p33, %s35, %s24
      %p37 = scmp.ge.s32.totalorder %s36, 1
      %s38 = scalar_select %p37, 0, %s36
      %s39 = sadd.s32 1, %s23
      %s40 = scalar_select %p37, %s39, %s23
      %p41 = scmp.ge.s32.totalorder %s40, 2
      %s42 = scalar_select %p41, 0, %s40
      %s43 = ssub.s32 %s23, %s42
      %s44 = ssub.s32 %s25, %s34
      %s45 = sor.u32 %s43, %s44
      %p46 = scmp.eq.s32.totalorder %s45, 0
      %s48 = sadd.s32 %s47, 1
      %s49 = scalar_select %p46, %s47, %s48
      %p52 = pneg %p46
      %p53 = scmp.eq.s32.totalorder %s16, 1
      %p54 = por %p52, %p53
      %p55 = scmp.ne.s32.totalorder %s47, %s50
      %p56 = scmp.eq.s32.totalorder %s16, 0
      %p57 = por %p55, %p56
      %p58 = scmp.ne.s32.totalorder %s47, %s50
      %p59 = scmp.eq.s32.totalorder %s21, 1
      %p60 = por %p58, %p59
      %p61 = scmp.ne.s32.totalorder %s50, %s51
      %p62 = scmp.eq.s32.totalorder %s21, 0
      %p63 = por %p61, %p62
      %p64 = scmp.ne.s32.totalorder %s50, %s51
      %p65 = scmp.eq.s32.totalorder %s22, 1
      %p66 = por %p64, %p65
      %p68 = scmp.ne.s32.totalorder %s51, %s67
      %p69 = scmp.eq.s32.totalorder %s22, 0
      %p70 = por %p68, %p69
      %s71 = ssub.s32 %s25, %s34
      %s72 = ssub.s32 %s24, %s38
      %s73 = sor.u32 %s71, %s72
      %p74 = scmp.eq.s32.totalorder %s73, 0
      %s76 = sadd.s32 %s75, 1
      %s77 = scalar_select %p74, %s75, %s76
      %p80 = pneg %p74
      %p81 = scmp.eq.s32.totalorder %s16, 1
      %p82 = por %p80, %p81
      %p83 = scmp.ne.s32.totalorder %s75, %s78
      %p84 = scmp.eq.s32.totalorder %s16, 0
      %p85 = por %p83, %p84
      %p86 = scmp.ne.s32.totalorder %s75, %s78
      %p87 = scmp.eq.s32.totalorder %s21, 1
      %p88 = por %p86, %p87
      %p89 = scmp.ne.s32.totalorder %s78, %s79
      %p90 = scmp.eq.s32.totalorder %s21, 0
      %p91 = por %p89, %p90
      %p92 = scmp.ne.s32.totalorder %s78, %s79
      %p93 = scmp.eq.s32.totalorder %s22, 1
      %p94 = por %p92, %p93
      %p96 = scmp.ne.s32.totalorder %s79, %s95
      %p97 = scmp.eq.s32.totalorder %s22, 0
      %p98 = por %p96, %p97
      %s99 = ssub.s32 %s24, %s38
      %p100 = scmp.eq.s32.totalorder %s99, 0
      %s102 = sadd.s32 %s101, 1
      %s103 = scalar_select %p100, %s101, %s102
      %p106 = pneg %p100
      %p107 = scmp.eq.s32.totalorder %s16, 1
      %p108 = por %p106, %p107
      %p109 = scmp.ne.s32.totalorder %s101, %s104
      %p110 = scmp.eq.s32.totalorder %s16, 0
      %p111 = por %p109, %p110
      %p112 = scmp.ne.s32.totalorder %s101, %s104
      %p113 = scmp.eq.s32.totalorder %s21, 1
      %p114 = por %p112, %p113
      %p115 = scmp.ne.s32.totalorder %s104, %s105
      %p116 = scmp.eq.s32.totalorder %s21, 0
      %p117 = por %p115, %p116
      %p118 = scmp.ne.s32.totalorder %s104, %s105
      %p119 = scmp.eq.s32.totalorder %s22, 1
      %p120 = por %p118, %p119
      %p122 = scmp.ne.s32.totalorder %s105, %s121
      %p123 = scmp.eq.s32.totalorder %s22, 0
      %p124 = por %p122, %p123
      %s125 = ssub.s32 %s23, %s42
      %s126 = ssub.s32 %s24, %s38
      %s127 = sor.u32 %s125, %s126
      %p128 = scmp.eq.s32.totalorder %s127, 0
      %s130 = sadd.s32 %s129, 1
      %s131 = scalar_select %p128, %s129, %s130
      %p134 = pneg %p128
      %p135 = scmp.eq.s32.totalorder %s16, 1
      %p136 = por %p134, %p135
      %p137 = scmp.ne.s32.totalorder %s129, %s132
      %p138 = scmp.eq.s32.totalorder %s16, 0
      %p139 = por %p137, %p138
      %p140 = scmp.ne.s32.totalorder %s129, %s132
      %p141 = scmp.eq.s32.totalorder %s21, 1
      %p142 = por %p140, %p141
      %p143 = scmp.ne.s32.totalorder %s132, %s133
      %p144 = scmp.eq.s32.totalorder %s21, 0
      %p145 = por %p143, %p144
      %p146 = scmp.ne.s32.totalorder %s132, %s133
      %p147 = scmp.eq.s32.totalorder %s22, 1
      %p148 = por %p146, %p147
      %p150 = scmp.ne.s32.totalorder %s133, %s149
      %p151 = scmp.eq.s32.totalorder %s22, 0
      %p152 = por %p150, %p151
      %p153 = scmp.le.s32.totalorder 1, %s16
      %p154 = scmp.lt.s32.totalorder %s16, 3
      %p155 = pnand %p153, %p154
      %p156 = pneg %p155
      // Predicated region
      $region9: #{tpu_custom_call.1} parent=5 // pred_check
        _
      $region10: #{tpu_custom_call.1} parent=5 // pred_check_branch
        %158 = sbr.rel (%p155) target = $region12
      $region11: #{tpu_custom_call.1} parent=5 // pred_region
        %s159 = ssub.s32 %s16, 1
        // Predicated region
        $region13: #{tpu_custom_call.1} parent=11 // pred_check
          %p160 = pneg %p91
        $region14: #{tpu_custom_call.1} parent=11 // pred_check_branch
          %162 = sbr.rel (%p160) target = $region16
        $region15: #{tpu_custom_call.1} parent=11 // pred_region
          %s163 = smul.u32 32, %s28
          %s165 = ssub.s32 2048, 2048
          %166 = vsyncadd [#allocation6], %s165
          %s167 = sadd.s32 %s27, %s163
          %s168 = smul.addr %s167, 64
          %s169 = scalar_lea.hbm %s1, %s168
          %s170 = sshll.u32 [#allocation5], 4
          %s171 = int_to_ptr.vmem [resolvable:$true] %s170
          %176 = dma.hbm_to_vmem [thread:$0]  %s169, 2048, %s171, [#allocation6], 64, 64, 4
        $region16: #{tpu_custom_call.1} parent=11 // pred_fallthru
          _
        // Predicated region
        $region17: #{tpu_custom_call.1} parent=11 // pred_check
          %p177 = pneg %p117
        $region18: #{tpu_custom_call.1} parent=11 // pred_check_branch
          %179 = sbr.rel (%p177) target = $region20
        $region19: #{tpu_custom_call.1} parent=11 // pred_region
          %p180 = scmp.lt.s32.totalorder %s27, 0
          %s181 = scalar_select %p180, %s27, 0
          %s182 = scalar_lea.vmem %s2, %s181
        $region20: #{tpu_custom_call.1} parent=11 // pred_fallthru
          _
      $region12: #{tpu_custom_call.1} parent=5 // pred_fallthru
        _
      %p183 = scmp.lt.s32.totalorder %s16, 2
      // Predicated region
      $region21: #{tpu_custom_call.1} parent=5 // pred_check
        %p184 = pneg %p183
      $region22: #{tpu_custom_call.1} parent=5 // pred_check_branch
        %186 = sbr.rel (%p184) target = $region24
      $region23: #{tpu_custom_call.1} parent=5 // pred_region
        // Predicated region
        $region25: #{tpu_custom_call.1} parent=23 // pred_check
          %p187 = pneg %p57
        $region26: #{tpu_custom_call.1} parent=23 // pred_check_branch
          %189 = sbr.rel (%p187) target = $region28
        $region27: #{tpu_custom_call.1} parent=23 // pred_region
          %s190 = sand.u32 %s47, 1
          %s191 = scalar_lea.sflag [#allocation3], %s190
          %s192 = sand.u32 %s47, 1
          %s193 = smul.addr %s192, 384
          %s194 = scalar_lea.vmem [#allocation2], %s193
          %s195 = smul.u32 48, %s23
          %s196 = smul.u32 2, %s25
          %s198 = ssub.s32 6144, 6144
          %199 = vsyncadd %s191, %s198
          %s200 = smul.addr %s195, 2
          %s201 = sadd.s32 %s196, %s200
          %s202 = smul.addr %s201, 64
          %s203 = scalar_lea.hbm %s0, %s202
          %s204 = sshll.u32 %s194, 4
          %s205 = int_to_ptr.vmem [resolvable:$true] %s204
          %210 = dma.hbm_to_vmem [thread:$0]  %s203, 6144, %s205, %s191, 128, 128, 8
        $region28: #{tpu_custom_call.1} parent=23 // pred_fallthru
          _
      $region24: #{tpu_custom_call.1} parent=5 // pred_fallthru
        _
      %p211 = scmp.le.s32.totalorder 1, %s16
      %p212 = scmp.lt.s32.totalorder %s16, 3
      %p213 = pnand %p211, %p212
      %p214 = pneg %p213
      // Predicated region
      $region29: #{tpu_custom_call.1} parent=5 // pred_check
        _
      $region30: #{tpu_custom_call.1} parent=5 // pred_check_branch
        %216 = sbr.rel (%p213) target = $region32
      $region31: #{tpu_custom_call.1} parent=5 // pred_region
        %s217 = ssub.s32 %s16, 1
        %s218 = sand.u32 %s50, 1
        %s219 = scalar_lea.sflag [#allocation3], %s218
        %s220 = sand.u32 %s50, 1
        %s221 = smul.addr %s220, 384
        %s222 = scalar_lea.vmem [#allocation2], %s221
        // Predicated region
        $region33: #{tpu_custom_call.1} parent=31 // pred_check
          %p223 = pneg %p63
        $region34: #{tpu_custom_call.1} parent=31 // pred_check_branch
          %225 = sbr.rel (%p223) target = $region36
        $region35: #{tpu_custom_call.1} parent=31 // pred_region
          %226 = dma.done %s219, 6144
        $region36: #{tpu_custom_call.1} parent=31 // pred_fallthru
          _
        // Predicated region
        $region37: #{tpu_custom_call.1} parent=31 // pred_check
          %p227 = pneg %p91
        $region38: #{tpu_custom_call.1} parent=31 // pred_check_branch
          %229 = sbr.rel (%p227) target = $region40
        $region39: #{tpu_custom_call.1} parent=31 // pred_region
          %230 = dma.done [#allocation6], 2048
        $region40: #{tpu_custom_call.1} parent=31 // pred_fallthru
          _
        %s231 = sand.u32 %s50, 1
        %s232 = scalar_lea.sflag [#allocation3], %s231
        %s233 = sand.u32 %s50, 1
        %s234 = smul.addr %s233, 384
        %s235 = scalar_lea.vmem [#allocation2], %s234
        %p236 = pneg %p63
        %p237 = pneg %p60
        %p238 = pneg %p91
        %p239 = pneg %p88
        %p240 = scmp.lt.s32.totalorder %s27, 0
        %s241 = scalar_select %p240, %s27, 0
        %s242 = scalar_lea.vmem %s2, %s241
        %p243 = pneg %p117
        %p244 = pneg %p114
        %p245 = pneg %p145
        %p246 = pneg %p142
        %s247 = sand.u32 %s132, 1
        %s248 = scalar_lea.sflag [#allocation4], %s247
        %s249 = sand.u32 %s132, 1
        %s250 = smul.addr %s249, 192
        %s251 = scalar_lea.vmem [#allocation7], %s250
        %s252 = smul.u32 48, %s26
        %s253 = smul.u32 2, %s28
        %s254 = smul.u32 32, %s28
        %p255 = scmp.lt.s32.totalorder %s27, 0
        %s256 = scalar_select %p255, %s27, 0
        %s257 = scalar_lea.vmem %s2, %s256
        %s258 = smul.u32 48, %s26
        %v260 = vld [vmem:[%s222] sm:$0xff]
        %v261 = vld [vmem:[%s222 + $0x8] sm:$0xff]
        %v262 = vld [vmem:[%s222 + $0x10] sm:$0xff]
        %v263 = vld [vmem:[%s222 + $0x18] sm:$0xff]
        %v264 = vld [vmem:[%s222 + $0x20] sm:$0xff]
        %v265 = vld [vmem:[%s222 + $0x28] sm:$0xff]
        %v266 = vld [vmem:[%s222 + $0x30] sm:$0xff]
        %v267 = vld [vmem:[%s222 + $0x38] sm:$0xff]
        %v268 = vld [vmem:[%s222 + $0x40] sm:$0xff]
        %v269 = vld [vmem:[%s222 + $0x48] sm:$0xff]
        %v270 = vld [vmem:[%s222 + $0x50] sm:$0xff]
        %v271 = vld [vmem:[%s222 + $0x58] sm:$0xff]
        %v272 = vld [vmem:[%s222 + $0x60] sm:$0xff]
        %v273 = vld [vmem:[%s222 + $0x68] sm:$0xff]
        %v274 = vld [vmem:[%s222 + $0x70] sm:$0xff]
        %v275 = vld [vmem:[%s222 + $0x78] sm:$0xff]
        %v276 = vld [vmem:[%s222 + $0x80] sm:$0xff]
        %v277 = vld [vmem:[%s222 + $0x88] sm:$0xff]
        %v278 = vld [vmem:[%s222 + $0x90] sm:$0xff]
        %v279 = vld [vmem:[%s222 + $0x98] sm:$0xff]
        %v280 = vld [vmem:[%s222 + $0xa0] sm:$0xff]
        %v281 = vld [vmem:[%s222 + $0xa8] sm:$0xff]
        %v282 = vld [vmem:[%s222 + $0xb0] sm:$0xff]
        %v283 = vld [vmem:[%s222 + $0xb8] sm:$0xff]
        %v284 = vld [vmem:[%s222 + $0xc0] sm:$0xff]
        %v285 = vld [vmem:[%s222 + $0xc8] sm:$0xff]
        %v286 = vld [vmem:[%s222 + $0xd0] sm:$0xff]
        %v287 = vld [vmem:[%s222 + $0xd8] sm:$0xff]
        %v288 = vld [vmem:[%s222 + $0xe0] sm:$0xff]
        %v289 = vld [vmem:[%s222 + $0xe8] sm:$0xff]
        %v290 = vld [vmem:[%s222 + $0xf0] sm:$0xff]
        %v291 = vld [vmem:[%s222 + $0xf8] sm:$0xff]
        %v292 = vld [vmem:[%s222 + $0x100] sm:$0xff]
        %v293 = vld [vmem:[%s222 + $0x108] sm:$0xff]
        %v294 = vld [vmem:[%s222 + $0x110] sm:$0xff]
        %v295 = vld [vmem:[%s222 + $0x118] sm:$0xff]
        %v296 = vld [vmem:[%s222 + $0x120] sm:$0xff]
        %v297 = vld [vmem:[%s222 + $0x128] sm:$0xff]
        %v298 = vld [vmem:[%s222 + $0x130] sm:$0xff]
        %v299 = vld [vmem:[%s222 + $0x138] sm:$0xff]
        %v300 = vld [vmem:[%s222 + $0x140] sm:$0xff]
        %v301 = vld [vmem:[%s222 + $0x148] sm:$0xff]
        %v302 = vld [vmem:[%s222 + $0x150] sm:$0xff]
        %v303 = vld [vmem:[%s222 + $0x158] sm:$0xff]
        %v304 = vld [vmem:[%s222 + $0x160] sm:$0xff]
        %v305 = vld [vmem:[%s222 + $0x168] sm:$0xff]
        %v306 = vld [vmem:[%s222 + $0x170] sm:$0xff]
        %v307 = vld [vmem:[%s222 + $0x178] sm:$0xff]
        %v308 = vld [vmem:[#allocation5] sm:$0xf]
        %v309 = vld [vmem:[#allocation5 + $0x4] sm:$0xf]
        %v310 = vld [vmem:[#allocation5 + $0x8] sm:$0xf]
        %v311 = vld [vmem:[#allocation5 + $0xc] sm:$0xf]
        %v312 = vld [vmem:[#allocation5 + $0x10] sm:$0xf]
        %v313 = vld [vmem:[#allocation5 + $0x14] sm:$0xf]
        %v314 = vld [vmem:[#allocation5 + $0x18] sm:$0xf]
        %v315 = vld [vmem:[#allocation5 + $0x1c] sm:$0xf]
        %v316 = vld [vmem:[#allocation5 + $0x20] sm:$0xf]
        %v317 = vld [vmem:[#allocation5 + $0x24] sm:$0xf]
        %v318 = vld [vmem:[#allocation5 + $0x28] sm:$0xf]
        %v319 = vld [vmem:[#allocation5 + $0x2c] sm:$0xf]
        %v320 = vld [vmem:[#allocation5 + $0x30] sm:$0xf]
        %v321 = vld [vmem:[#allocation5 + $0x34] sm:$0xf]
        %v322 = vld [vmem:[#allocation5 + $0x38] sm:$0xf]
        %v323 = vld [vmem:[#allocation5 + $0x3c] sm:$0xf]
        %v324 = vld [vmem:[#allocation5 + $0x40] sm:$0xf]
        %v325 = vld [vmem:[#allocation5 + $0x44] sm:$0xf]
        %v326 = vld [vmem:[#allocation5 + $0x48] sm:$0xf]
        %v327 = vld [vmem:[#allocation5 + $0x4c] sm:$0xf]
        %v328 = vld [vmem:[#allocation5 + $0x50] sm:$0xf]
        %v329 = vld [vmem:[#allocation5 + $0x54] sm:$0xf]
        %v330 = vld [vmem:[#allocation5 + $0x58] sm:$0xf]
        %v331 = vld [vmem:[#allocation5 + $0x5c] sm:$0xf]
        %v332 = vld [vmem:[#allocation5 + $0x60] sm:$0xf]
        %v333 = vld [vmem:[#allocation5 + $0x64] sm:$0xf]
        %v334 = vld [vmem:[#allocation5 + $0x68] sm:$0xf]
        %v335 = vld [vmem:[#allocation5 + $0x6c] sm:$0xf]
        %v336 = vld [vmem:[#allocation5 + $0x70] sm:$0xf]
        %v337 = vld [vmem:[#allocation5 + $0x74] sm:$0xf]
        %v338 = vld [vmem:[#allocation5 + $0x78] sm:$0xf]
        %v339 = vld [vmem:[#allocation5 + $0x7c] sm:$0xf]
        %v340 = vld [vmem:[%s257] sm:$0x1]
        %v342 = vlaneseq
        %v343 = vshrl.u32 %v342, 7
        %v344 = vsub.s32 0, %v343
        %v345 = vrot.slane %v340, %v344
        %v395 = vunpack.c.l.b16 %v260
        %v396 = vunpack.c.h.b16 %v260
        %v397 = vunpack.c.l.b16 %v261
        %v398 = vunpack.c.h.b16 %v261
        %v399 = vunpack.c.l.b16 %v262
        %v400 = vunpack.c.h.b16 %v262
        %v401 = vunpack.c.l.b16 %v263
        %v402 = vunpack.c.h.b16 %v263
        %v403 = vunpack.c.l.b16 %v264
        %v404 = vunpack.c.h.b16 %v264
        %v405 = vunpack.c.l.b16 %v265
        %v406 = vunpack.c.h.b16 %v265
        %v407 = vunpack.c.l.b16 %v266
        %v408 = vunpack.c.h.b16 %v266
        %v409 = vunpack.c.l.b16 %v267
        %v410 = vunpack.c.h.b16 %v267
        %v411 = vunpack.c.l.b16 %v268
        %v412 = vunpack.c.h.b16 %v268
        %v413 = vunpack.c.l.b16 %v269
        %v414 = vunpack.c.h.b16 %v269
        %v415 = vunpack.c.l.b16 %v270
        %v416 = vunpack.c.h.b16 %v270
        %v417 = vunpack.c.l.b16 %v271
        %v418 = vunpack.c.h.b16 %v271
        %v419 = vunpack.c.l.b16 %v272
        %v420 = vunpack.c.h.b16 %v272
        %v421 = vunpack.c.l.b16 %v273
        %v422 = vunpack.c.h.b16 %v273
        %v423 = vunpack.c.l.b16 %v274
        %v424 = vunpack.c.h.b16 %v274
        %v425 = vunpack.c.l.b16 %v275
        %v426 = vunpack.c.h.b16 %v275
        %v427 = vunpack.c.l.b16 %v276
        %v428 = vunpack.c.h.b16 %v276
        %v429 = vunpack.c.l.b16 %v277
        %v430 = vunpack.c.h.b16 %v277
        %v431 = vunpack.c.l.b16 %v278
        %v432 = vunpack.c.h.b16 %v278
        %v433 = vunpack.c.l.b16 %v279
        %v434 = vunpack.c.h.b16 %v279
        %v435 = vunpack.c.l.b16 %v280
        %v436 = vunpack.c.h.b16 %v280
        %v437 = vunpack.c.l.b16 %v281
        %v438 = vunpack.c.h.b16 %v281
        %v439 = vunpack.c.l.b16 %v282
        %v440 = vunpack.c.h.b16 %v282
        %v441 = vunpack.c.l.b16 %v283
        %v442 = vunpack.c.h.b16 %v283
        %v443 = vunpack.c.l.b16 %v284
        %v444 = vunpack.c.h.b16 %v284
        %v445 = vunpack.c.l.b16 %v285
        %v446 = vunpack.c.h.b16 %v285
        %v447 = vunpack.c.l.b16 %v286
        %v448 = vunpack.c.h.b16 %v286
        %v449 = vunpack.c.l.b16 %v287
        %v450 = vunpack.c.h.b16 %v287
        %v451 = vunpack.c.l.b16 %v288
        %v452 = vunpack.c.h.b16 %v288
        %v453 = vunpack.c.l.b16 %v289
        %v454 = vunpack.c.h.b16 %v289
        %v455 = vunpack.c.l.b16 %v290
        %v456 = vunpack.c.h.b16 %v290
        %v457 = vunpack.c.l.b16 %v291
        %v458 = vunpack.c.h.b16 %v291
        %v459 = vunpack.c.l.b16 %v292
        %v460 = vunpack.c.h.b16 %v292
        %v461 = vunpack.c.l.b16 %v293
        %v462 = vunpack.c.h.b16 %v293
        %v463 = vunpack.c.l.b16 %v294
        %v464 = vunpack.c.h.b16 %v294
        %v465 = vunpack.c.l.b16 %v295
        %v466 = vunpack.c.h.b16 %v295
        %v467 = vunpack.c.l.b16 %v296
        %v468 = vunpack.c.h.b16 %v296
        %v469 = vunpack.c.l.b16 %v297
        %v470 = vunpack.c.h.b16 %v297
        %v471 = vunpack.c.l.b16 %v298
        %v472 = vunpack.c.h.b16 %v298
        %v473 = vunpack.c.l.b16 %v299
        %v474 = vunpack.c.h.b16 %v299
        %v475 = vunpack.c.l.b16 %v300
        %v476 = vunpack.c.h.b16 %v300
        %v477 = vunpack.c.l.b16 %v301
        %v478 = vunpack.c.h.b16 %v301
        %v479 = vunpack.c.l.b16 %v302
        %v480 = vunpack.c.h.b16 %v302
        %v481 = vunpack.c.l.b16 %v303
        %v482 = vunpack.c.h.b16 %v303
        %v483 = vunpack.c.l.b16 %v304
        %v484 = vunpack.c.h.b16 %v304
        %v485 = vunpack.c.l.b16 %v305
        %v486 = vunpack.c.h.b16 %v305
        %v487 = vunpack.c.l.b16 %v306
        %v488 = vunpack.c.h.b16 %v306
        %v489 = vunpack.c.l.b16 %v307
        %v490 = vunpack.c.h.b16 %v307
        %v491 = vpack.c.b16 %v397, %v395
        %v492 = vpack.c.b16 %v398, %v396
        %v493 = vpack.c.b16 %v401, %v399
        %v494 = vpack.c.b16 %v402, %v400
        %v495 = vpack.c.b16 %v405, %v403
        %v496 = vpack.c.b16 %v406, %v404
        %v497 = vpack.c.b16 %v409, %v407
        %v498 = vpack.c.b16 %v410, %v408
        %v499 = vpack.c.b16 %v413, %v411
        %v500 = vpack.c.b16 %v414, %v412
        %v501 = vpack.c.b16 %v417, %v415
        %v502 = vpack.c.b16 %v418, %v416
        %v503 = vpack.c.b16 %v421, %v419
        %v504 = vpack.c.b16 %v422, %v420
        %v505 = vpack.c.b16 %v425, %v423
        %v506 = vpack.c.b16 %v426, %v424
        %v507 = vpack.c.b16 %v429, %v427
        %v508 = vpack.c.b16 %v430, %v428
        %v509 = vpack.c.b16 %v433, %v431
        %v510 = vpack.c.b16 %v434, %v432
        %v511 = vpack.c.b16 %v437, %v435
        %v512 = vpack.c.b16 %v438, %v436
        %v513 = vpack.c.b16 %v441, %v439
        %v514 = vpack.c.b16 %v442, %v440
        %v515 = vpack.c.b16 %v445, %v443
        %v516 = vpack.c.b16 %v446, %v444
        %v517 = vpack.c.b16 %v449, %v447
        %v518 = vpack.c.b16 %v450, %v448
        %v519 = vpack.c.b16 %v453, %v451
        %v520 = vpack.c.b16 %v454, %v452
        %v521 = vpack.c.b16 %v457, %v455
        %v522 = vpack.c.b16 %v458, %v456
        %v523 = vpack.c.b16 %v461, %v459
        %v524 = vpack.c.b16 %v462, %v460
        %v525 = vpack.c.b16 %v465, %v463
        %v526 = vpack.c.b16 %v466, %v464
        %v527 = vpack.c.b16 %v469, %v467
        %v528 = vpack.c.b16 %v470, %v468
        %v529 = vpack.c.b16 %v473, %v471
        %v530 = vpack.c.b16 %v474, %v472
        %v531 = vpack.c.b16 %v477, %v475
        %v532 = vpack.c.b16 %v478, %v476
        %v533 = vpack.c.b16 %v481, %v479
        %v534 = vpack.c.b16 %v482, %v480
        %v535 = vpack.c.b16 %v485, %v483
        %v536 = vpack.c.b16 %v486, %v484
        %v537 = vpack.c.b16 %v489, %v487
        %v538 = vpack.c.b16 %v490, %v488
        %v619 = vunpack.c.l.b16 %v308
        %v620 = vunpack.c.l.b16 %v309
        %v621 = vunpack.c.l.b16 %v310
        %v622 = vunpack.c.l.b16 %v311
        %v623 = vunpack.c.l.b16 %v312
        %v624 = vunpack.c.l.b16 %v313
        %v625 = vunpack.c.l.b16 %v314
        %v626 = vunpack.c.l.b16 %v315
        %v627 = vunpack.c.l.b16 %v316
        %v628 = vunpack.c.l.b16 %v317
        %v629 = vunpack.c.l.b16 %v318
        %v630 = vunpack.c.l.b16 %v319
        %v631 = vunpack.c.l.b16 %v320
        %v632 = vunpack.c.l.b16 %v321
        %v633 = vunpack.c.l.b16 %v322
        %v634 = vunpack.c.l.b16 %v323
        %v635 = vunpack.c.l.b16 %v324
        %v636 = vunpack.c.l.b16 %v325
        %v637 = vunpack.c.l.b16 %v326
        %v638 = vunpack.c.l.b16 %v327
        %v639 = vunpack.c.l.b16 %v328
        %v640 = vunpack.c.l.b16 %v329
        %v641 = vunpack.c.l.b16 %v330
        %v642 = vunpack.c.l.b16 %v331
        %v643 = vunpack.c.l.b16 %v332
        %v644 = vunpack.c.l.b16 %v333
        %v645 = vunpack.c.l.b16 %v334
        %v646 = vunpack.c.l.b16 %v335
        %v647 = vunpack.c.l.b16 %v336
        %v648 = vunpack.c.l.b16 %v337
        %v649 = vunpack.c.l.b16 %v338
        %v650 = vunpack.c.l.b16 %v339
        %v651 = vpack.c.b16 %v620, %v619
        %v652 = vpack.c.b16 %v622, %v621
        %v653 = vpack.c.b16 %v624, %v623
        %v654 = vpack.c.b16 %v626, %v625
        %v655 = vpack.c.b16 %v628, %v627
        %v656 = vpack.c.b16 %v630, %v629
        %v657 = vpack.c.b16 %v632, %v631
        %v658 = vpack.c.b16 %v634, %v633
        %v659 = vpack.c.b16 %v636, %v635
        %v660 = vpack.c.b16 %v638, %v637
        %v661 = vpack.c.b16 %v640, %v639
        %v662 = vpack.c.b16 %v642, %v641
        %v663 = vpack.c.b16 %v644, %v643
        %v664 = vpack.c.b16 %v646, %v645
        %v665 = vpack.c.b16 %v648, %v647
        %v666 = vpack.c.b16 %v650, %v649
        %683 = vmatprep.subr.bf16.mxu0 0
        %684 = vmatpush1.bf16.msra.mxu0 %v658
        %685 = vmatprep.subr.bf16.mxu0 0
        %686 = vmatpush1.bf16.msra.mxu0 %v657
        %687 = vmatprep.subr.bf16.mxu0 0
        %688 = vmatpush1.bf16.msra.mxu0 %v656
        %689 = vmatprep.subr.bf16.mxu0 0
        %690 = vmatpush1.bf16.msra.mxu0 %v655
        %691 = vmatprep.subr.bf16.mxu0 0
        %692 = vmatpush1.bf16.msra.mxu0 %v654
        %693 = vmatprep.subr.bf16.mxu0 0
        %694 = vmatpush1.bf16.msra.mxu0 %v653
        %695 = vmatprep.subr.bf16.mxu0 0
        %696 = vmatpush1.bf16.msra.mxu0 %v652
        %697 = vmatprep.subr.bf16.mxu0 0
        %698 = vmatpush1.bf16.msra.mxu0 %v651
        %699 = vmatprep.subr.bf16.mxu0 0
        %700 = vmatpush2.bf16.msra.mxu0 %v666
        %701 = vmatprep.subr.bf16.mxu0 0
        %702 = vmatpush2.bf16.msra.mxu0 %v665
        %703 = vmatprep.subr.bf16.mxu0 0
        %704 = vmatpush2.bf16.msra.mxu0 %v664
        %705 = vmatprep.subr.bf16.mxu0 0
        %706 = vmatpush2.bf16.msra.mxu0 %v663
        %707 = vmatprep.subr.bf16.mxu0 0
        %708 = vmatpush2.bf16.msra.mxu0 %v662
        %709 = vmatprep.subr.bf16.mxu0 0
        %710 = vmatpush2.bf16.msra.mxu0 %v661
        %711 = vmatprep.subr.bf16.mxu0 0
        %712 = vmatpush2.bf16.msra.mxu0 %v660
        %713 = vmatprep.subr.bf16.mxu0 0
        %714 = vmatpush2.bf16.msra.mxu0 %v659
        %715 = vmatprep.mubr.bf16.mxu0 %v492
        %716 = vmatmul.mubr.bf16.gmra.mxu0 %v491
        %v717 = vpop.f32.mrf.mxu0
        %v718 = vadd.f32 %v345, %v717
        %v719 = vpop.f32.mrf.mxu0
        %v720 = vpop.f32.mrf.mxu0
        %v721 = vadd.f32 %v345, %v720
        %v722 = vpop.f32.mrf.mxu0
        %723 = vmatprep.mubr.bf16.mxu0 %v494
        %724 = vmatmul.mubr.bf16.gmra.mxu0 %v493
        %v725 = vpop.f32.mrf.mxu0
        %v726 = vadd.f32 %v345, %v725
        %v727 = vpop.f32.mrf.mxu0
        %v728 = vpop.f32.mrf.mxu0
        %v729 = vadd.f32 %v345, %v728
        %v730 = vpop.f32.mrf.mxu0
        %731 = vmatprep.mubr.bf16.mxu0 %v496
        %732 = vmatmul.mubr.bf16.gmra.mxu0 %v495
        %v733 = vpop.f32.mrf.mxu0
        %v734 = vadd.f32 %v345, %v733
        %v735 = vpop.f32.mrf.mxu0
        %v736 = vpop.f32.mrf.mxu0
        %v737 = vadd.f32 %v345, %v736
        %v738 = vpop.f32.mrf.mxu0
        %739 = vmatprep.mubr.bf16.mxu0 %v498
        %740 = vmatmul.mubr.bf16.gmra.mxu0 %v497
        %v741 = vpop.f32.mrf.mxu0
        %v742 = vadd.f32 %v345, %v741
        %v743 = vpop.f32.mrf.mxu0
        %v744 = vpop.f32.mrf.mxu0
        %v745 = vadd.f32 %v345, %v744
        %v746 = vpop.f32.mrf.mxu0
        %747 = vmatprep.mubr.bf16.mxu0 %v500
        %748 = vmatmul.mubr.bf16.gmra.mxu0 %v499
        %v749 = vpop.f32.mrf.mxu0
        %v750 = vadd.f32 %v345, %v749
        %v751 = vpop.f32.mrf.mxu0
        %v752 = vpop.f32.mrf.mxu0
        %v753 = vadd.f32 %v345, %v752
        %v754 = vpop.f32.mrf.mxu0
        %755 = vmatprep.mubr.bf16.mxu0 %v502
        %756 = vmatmul.mubr.bf16.gmra.mxu0 %v501
        %v757 = vpop.f32.mrf.mxu0
        %v758 = vadd.f32 %v345, %v757
        %v759 = vpop.f32.mrf.mxu0
        %v760 = vpop.f32.mrf.mxu0
        %v761 = vadd.f32 %v345, %v760
        %v762 = vpop.f32.mrf.mxu0
        %763 = vmatprep.mubr.bf16.mxu0 %v504
        %764 = vmatmul.mubr.bf16.gmra.mxu0 %v503
        %v765 = vpop.f32.mrf.mxu0
        %v766 = vadd.f32 %v345, %v765
        %v767 = vpop.f32.mrf.mxu0
        %v768 = vpop.f32.mrf.mxu0
        %v769 = vadd.f32 %v345, %v768
        %v770 = vpop.f32.mrf.mxu0
        %771 = vmatprep.mubr.bf16.mxu0 %v506
        %772 = vmatmul.mubr.bf16.gmra.mxu0 %v505
        %v773 = vpop.f32.mrf.mxu0
        %v774 = vadd.f32 %v345, %v773
        %v775 = vpop.f32.mrf.mxu0
        %v776 = vpop.f32.mrf.mxu0
        %v777 = vadd.f32 %v345, %v776
        %v778 = vpop.f32.mrf.mxu0
        %779 = vmatprep.mubr.bf16.mxu0 %v508
        %780 = vmatmul.mubr.bf16.gmra.mxu0 %v507
        %v781 = vpop.f32.mrf.mxu0
        %v782 = vadd.f32 %v345, %v781
        %v783 = vpop.f32.mrf.mxu0
        %v784 = vpop.f32.mrf.mxu0
        %v785 = vadd.f32 %v345, %v784
        %v786 = vpop.f32.mrf.mxu0
        %787 = vmatprep.mubr.bf16.mxu0 %v510
        %788 = vmatmul.mubr.bf16.gmra.mxu0 %v509
        %v789 = vpop.f32.mrf.mxu0
        %v790 = vadd.f32 %v345, %v789
        %v791 = vpop.f32.mrf.mxu0
        %v792 = vpop.f32.mrf.mxu0
        %v793 = vadd.f32 %v345, %v792
        %v794 = vpop.f32.mrf.mxu0
        %795 = vmatprep.mubr.bf16.mxu0 %v512
        %796 = vmatmul.mubr.bf16.gmra.mxu0 %v511
        %v797 = vpop.f32.mrf.mxu0
        %v798 = vadd.f32 %v345, %v797
        %v799 = vpop.f32.mrf.mxu0
        %v800 = vpop.f32.mrf.mxu0
        %v801 = vadd.f32 %v345, %v800
        %v802 = vpop.f32.mrf.mxu0
        %803 = vmatprep.mubr.bf16.mxu0 %v514
        %804 = vmatmul.mubr.bf16.gmra.mxu0 %v513
        %v805 = vpop.f32.mrf.mxu0
        %v806 = vadd.f32 %v345, %v805
        %v807 = vpop.f32.mrf.mxu0
        %v808 = vpop.f32.mrf.mxu0
        %v809 = vadd.f32 %v345, %v808
        %v810 = vpop.f32.mrf.mxu0
        %811 = vmatprep.mubr.bf16.mxu0 %v516
        %812 = vmatmul.mubr.bf16.gmra.mxu0 %v515
        %v813 = vpop.f32.mrf.mxu0
        %v814 = vadd.f32 %v345, %v813
        %v815 = vpop.f32.mrf.mxu0
        %v816 = vpop.f32.mrf.mxu0
        %v817 = vadd.f32 %v345, %v816
        %v818 = vpop.f32.mrf.mxu0
        %819 = vmatprep.mubr.bf16.mxu0 %v518
        %820 = vmatmul.mubr.bf16.gmra.mxu0 %v517
        %v821 = vpop.f32.mrf.mxu0
        %v822 = vadd.f32 %v345, %v821
        %v823 = vpop.f32.mrf.mxu0
        %v824 = vpop.f32.mrf.mxu0
        %v825 = vadd.f32 %v345, %v824
        %v826 = vpop.f32.mrf.mxu0
        %827 = vmatprep.mubr.bf16.mxu0 %v520
        %828 = vmatmul.mubr.bf16.gmra.mxu0 %v519
        %v829 = vpop.f32.mrf.mxu0
        %v830 = vadd.f32 %v345, %v829
        %v831 = vpop.f32.mrf.mxu0
        %v832 = vpop.f32.mrf.mxu0
        %v833 = vadd.f32 %v345, %v832
        %v834 = vpop.f32.mrf.mxu0
        %835 = vmatprep.mubr.bf16.mxu0 %v522
        %836 = vmatmul.mubr.bf16.gmra.mxu0 %v521
        %v837 = vpop.f32.mrf.mxu0
        %v838 = vadd.f32 %v345, %v837
        %v839 = vpop.f32.mrf.mxu0
        %v840 = vpop.f32.mrf.mxu0
        %v841 = vadd.f32 %v345, %v840
        %v842 = vpop.f32.mrf.mxu0
        %843 = vmatprep.mubr.bf16.mxu0 %v524
        %844 = vmatmul.mubr.bf16.gmra.mxu0 %v523
        %v845 = vpop.f32.mrf.mxu0
        %v846 = vadd.f32 %v345, %v845
        %v847 = vpop.f32.mrf.mxu0
        %v848 = vpop.f32.mrf.mxu0
        %v849 = vadd.f32 %v345, %v848
        %v850 = vpop.f32.mrf.mxu0
        %851 = vmatprep.mubr.bf16.mxu0 %v526
        %852 = vmatmul.mubr.bf16.gmra.mxu0 %v525
        %v853 = vpop.f32.mrf.mxu0
        %v854 = vadd.f32 %v345, %v853
        %v855 = vpop.f32.mrf.mxu0
        %v856 = vpop.f32.mrf.mxu0
        %v857 = vadd.f32 %v345, %v856
        %v858 = vpop.f32.mrf.mxu0
        %859 = vmatprep.mubr.bf16.mxu0 %v528
        %860 = vmatmul.mubr.bf16.gmra.mxu0 %v527
        %v861 = vpop.f32.mrf.mxu0
        %v862 = vadd.f32 %v345, %v861
        %v863 = vpop.f32.mrf.mxu0
        %v864 = vpop.f32.mrf.mxu0
        %v865 = vadd.f32 %v345, %v864
        %v866 = vpop.f32.mrf.mxu0
        %867 = vmatprep.mubr.bf16.mxu0 %v530
        %868 = vmatmul.mubr.bf16.gmra.mxu0 %v529
        %v869 = vpop.f32.mrf.mxu0
        %v870 = vadd.f32 %v345, %v869
        %v871 = vpop.f32.mrf.mxu0
        %v872 = vpop.f32.mrf.mxu0
        %v873 = vadd.f32 %v345, %v872
        %v874 = vpop.f32.mrf.mxu0
        %875 = vmatprep.mubr.bf16.mxu0 %v532
        %876 = vmatmul.mubr.bf16.gmra.mxu0 %v531
        %v877 = vpop.f32.mrf.mxu0
        %v878 = vadd.f32 %v345, %v877
        %v879 = vpop.f32.mrf.mxu0
        %v880 = vpop.f32.mrf.mxu0
        %v881 = vadd.f32 %v345, %v880
        %v882 = vpop.f32.mrf.mxu0
        %883 = vmatprep.mubr.bf16.mxu0 %v534
        %884 = vmatmul.mubr.bf16.gmra.mxu0 %v533
        %v885 = vpop.f32.mrf.mxu0
        %v886 = vadd.f32 %v345, %v885
        %v887 = vpop.f32.mrf.mxu0
        %v888 = vpop.f32.mrf.mxu0
        %v889 = vadd.f32 %v345, %v888
        %v890 = vpop.f32.mrf.mxu0
        %891 = vmatprep.mubr.bf16.mxu0 %v536
        %892 = vmatmul.mubr.bf16.gmra.mxu0 %v535
        %v893 = vpop.f32.mrf.mxu0
        %v894 = vadd.f32 %v345, %v893
        %v895 = vpop.f32.mrf.mxu0
        %v896 = vpop.f32.mrf.mxu0
        %v897 = vadd.f32 %v345, %v896
        %v898 = vpop.f32.mrf.mxu0
        %899 = vmatprep.mubr.bf16.mxu0 %v538
        %900 = vmatmul.mubr.bf16.gmra.mxu0 %v537
        %v901 = vpop.f32.mrf.mxu0
        %v902 = vadd.f32 %v345, %v901
        %v903 = vpop.f32.mrf.mxu0
        %v904 = vpop.f32.mrf.mxu0
        %v905 = vadd.f32 %v345, %v904
        %v906 = vpop.f32.mrf.mxu0
        %907 = vdwg.mxu0
        %v908 = vmax.f32 %v718, 0.0
        %v909 = vmax.f32 %v721, 0.0
        %v910 = vmax.f32 %v726, 0.0
        %v911 = vmax.f32 %v729, 0.0
        %v912 = vmax.f32 %v734, 0.0
        %v913 = vmax.f32 %v737, 0.0
        %v914 = vmax.f32 %v742, 0.0
        %v915 = vmax.f32 %v745, 0.0
        %v916 = vmax.f32 %v750, 0.0
        %v917 = vmax.f32 %v753, 0.0
        %v918 = vmax.f32 %v758, 0.0
        %v919 = vmax.f32 %v761, 0.0
        %v920 = vmax.f32 %v766, 0.0
        %v921 = vmax.f32 %v769, 0.0
        %v922 = vmax.f32 %v774, 0.0
        %v923 = vmax.f32 %v777, 0.0
        %v924 = vmax.f32 %v782, 0.0
        %v925 = vmax.f32 %v785, 0.0
        %v926 = vmax.f32 %v790, 0.0
        %v927 = vmax.f32 %v793, 0.0
        %v928 = vmax.f32 %v798, 0.0
        %v929 = vmax.f32 %v801, 0.0
        %v930 = vmax.f32 %v806, 0.0
        %v931 = vmax.f32 %v809, 0.0
        %v932 = vmax.f32 %v814, 0.0
        %v933 = vmax.f32 %v817, 0.0
        %v934 = vmax.f32 %v822, 0.0
        %v935 = vmax.f32 %v825, 0.0
        %v936 = vmax.f32 %v830, 0.0
        %v937 = vmax.f32 %v833, 0.0
        %v938 = vmax.f32 %v838, 0.0
        %v939 = vmax.f32 %v841, 0.0
        %v940 = vmax.f32 %v846, 0.0
        %v941 = vmax.f32 %v849, 0.0
        %v942 = vmax.f32 %v854, 0.0
        %v943 = vmax.f32 %v857, 0.0
        %v944 = vmax.f32 %v862, 0.0
        %v945 = vmax.f32 %v865, 0.0
        %v946 = vmax.f32 %v870, 0.0
        %v947 = vmax.f32 %v873, 0.0
        %v948 = vmax.f32 %v878, 0.0
        %v949 = vmax.f32 %v881, 0.0
        %v950 = vmax.f32 %v886, 0.0
        %v951 = vmax.f32 %v889, 0.0
        %v952 = vmax.f32 %v894, 0.0
        %v953 = vmax.f32 %v897, 0.0
        %v954 = vmax.f32 %v902, 0.0
        %v955 = vmax.f32 %v905, 0.0
        %v956 = vpack.c.bf16 %v909, %v908
        %v957 = vpack.c.bf16 %v911, %v910
        %v958 = vpack.c.bf16 %v913, %v912
        %v959 = vpack.c.bf16 %v915, %v914
        %v960 = vpack.c.bf16 %v917, %v916
        %v961 = vpack.c.bf16 %v919, %v918
        %v962 = vpack.c.bf16 %v921, %v920
        %v963 = vpack.c.bf16 %v923, %v922
        %v964 = vpack.c.bf16 %v925, %v924
        %v965 = vpack.c.bf16 %v927, %v926
        %v966 = vpack.c.bf16 %v929, %v928
        %v967 = vpack.c.bf16 %v931, %v930
        %v968 = vpack.c.bf16 %v933, %v932
        %v969 = vpack.c.bf16 %v935, %v934
        %v970 = vpack.c.bf16 %v937, %v936
        %v971 = vpack.c.bf16 %v939, %v938
        %v972 = vpack.c.bf16 %v941, %v940
        %v973 = vpack.c.bf16 %v943, %v942
        %v974 = vpack.c.bf16 %v945, %v944
        %v975 = vpack.c.bf16 %v947, %v946
        %v976 = vpack.c.bf16 %v949, %v948
        %v977 = vpack.c.bf16 %v951, %v950
        %v978 = vpack.c.bf16 %v953, %v952
        %v979 = vpack.c.bf16 %v955, %v954
        %v1004 = vunpack.c.l.b16 %v956
        %v1005 = vunpack.c.h.b16 %v956
        %v1006 = vunpack.c.l.b16 %v957
        %v1007 = vunpack.c.h.b16 %v957
        %v1008 = vunpack.c.l.b16 %v958
        %v1009 = vunpack.c.h.b16 %v958
        %v1010 = vunpack.c.l.b16 %v959
        %v1011 = vunpack.c.h.b16 %v959
        %v1012 = vunpack.c.l.b16 %v960
        %v1013 = vunpack.c.h.b16 %v960
        %v1014 = vunpack.c.l.b16 %v961
        %v1015 = vunpack.c.h.b16 %v961
        %v1016 = vunpack.c.l.b16 %v962
        %v1017 = vunpack.c.h.b16 %v962
        %v1018 = vunpack.c.l.b16 %v963
        %v1019 = vunpack.c.h.b16 %v963
        %v1020 = vunpack.c.l.b16 %v964
        %v1021 = vunpack.c.h.b16 %v964
        %v1022 = vunpack.c.l.b16 %v965
        %v1023 = vunpack.c.h.b16 %v965
        %v1024 = vunpack.c.l.b16 %v966
        %v1025 = vunpack.c.h.b16 %v966
        %v1026 = vunpack.c.l.b16 %v967
        %v1027 = vunpack.c.h.b16 %v967
        %v1028 = vunpack.c.l.b16 %v968
        %v1029 = vunpack.c.h.b16 %v968
        %v1030 = vunpack.c.l.b16 %v969
        %v1031 = vunpack.c.h.b16 %v969
        %v1032 = vunpack.c.l.b16 %v970
        %v1033 = vunpack.c.h.b16 %v970
        %v1034 = vunpack.c.l.b16 %v971
        %v1035 = vunpack.c.h.b16 %v971
        %v1036 = vunpack.c.l.b16 %v972
        %v1037 = vunpack.c.h.b16 %v972
        %v1038 = vunpack.c.l.b16 %v973
        %v1039 = vunpack.c.h.b16 %v973
        %v1040 = vunpack.c.l.b16 %v974
        %v1041 = vunpack.c.h.b16 %v974
        %v1042 = vunpack.c.l.b16 %v975
        %v1043 = vunpack.c.h.b16 %v975
        %v1044 = vunpack.c.l.b16 %v976
        %v1045 = vunpack.c.h.b16 %v976
        %v1046 = vunpack.c.l.b16 %v977
        %v1047 = vunpack.c.h.b16 %v977
        %v1048 = vunpack.c.l.b16 %v978
        %v1049 = vunpack.c.h.b16 %v978
        %v1050 = vunpack.c.l.b16 %v979
        %v1051 = vunpack.c.h.b16 %v979
        %v1052 = vpack.c.b16 %v1004, %v1004
        %v1053 = vpack.c.b16 %v1005, %v1005
        %v1054 = vpack.c.b16 %v1006, %v1006
        %v1055 = vpack.c.b16 %v1007, %v1007
        %v1056 = vpack.c.b16 %v1008, %v1008
        %v1057 = vpack.c.b16 %v1009, %v1009
        %v1058 = vpack.c.b16 %v1010, %v1010
        %v1059 = vpack.c.b16 %v1011, %v1011
        %v1060 = vpack.c.b16 %v1012, %v1012
        %v1061 = vpack.c.b16 %v1013, %v1013
        %v1062 = vpack.c.b16 %v1014, %v1014
        %v1063 = vpack.c.b16 %v1015, %v1015
        %v1064 = vpack.c.b16 %v1016, %v1016
        %v1065 = vpack.c.b16 %v1017, %v1017
        %v1066 = vpack.c.b16 %v1018, %v1018
        %v1067 = vpack.c.b16 %v1019, %v1019
        %v1068 = vpack.c.b16 %v1020, %v1020
        %v1069 = vpack.c.b16 %v1021, %v1021
        %v1070 = vpack.c.b16 %v1022, %v1022
        %v1071 = vpack.c.b16 %v1023, %v1023
        %v1072 = vpack.c.b16 %v1024, %v1024
        %v1073 = vpack.c.b16 %v1025, %v1025
        %v1074 = vpack.c.b16 %v1026, %v1026
        %v1075 = vpack.c.b16 %v1027, %v1027
        %v1076 = vpack.c.b16 %v1028, %v1028
        %v1077 = vpack.c.b16 %v1029, %v1029
        %v1078 = vpack.c.b16 %v1030, %v1030
        %v1079 = vpack.c.b16 %v1031, %v1031
        %v1080 = vpack.c.b16 %v1032, %v1032
        %v1081 = vpack.c.b16 %v1033, %v1033
        %v1082 = vpack.c.b16 %v1034, %v1034
        %v1083 = vpack.c.b16 %v1035, %v1035
        %v1084 = vpack.c.b16 %v1036, %v1036
        %v1085 = vpack.c.b16 %v1037, %v1037
        %v1086 = vpack.c.b16 %v1038, %v1038
        %v1087 = vpack.c.b16 %v1039, %v1039
        %v1088 = vpack.c.b16 %v1040, %v1040
        %v1089 = vpack.c.b16 %v1041, %v1041
        %v1090 = vpack.c.b16 %v1042, %v1042
        %v1091 = vpack.c.b16 %v1043, %v1043
        %v1092 = vpack.c.b16 %v1044, %v1044
        %v1093 = vpack.c.b16 %v1045, %v1045
        %v1094 = vpack.c.b16 %v1046, %v1046
        %v1095 = vpack.c.b16 %v1047, %v1047
        %v1096 = vpack.c.b16 %v1048, %v1048
        %v1097 = vpack.c.b16 %v1049, %v1049
        %v1098 = vpack.c.b16 %v1050, %v1050
        %v1099 = vpack.c.b16 %v1051, %v1051
        %1148 = vst [vmem:[%s251] sm:$0xf] %v1052
        %1149 = vst [vmem:[%s251 + $0x4] sm:$0xf] %v1053
        %1150 = vst [vmem:[%s251 + $0x8] sm:$0xf] %v1054
        %1151 = vst [vmem:[%s251 + $0xc] sm:$0xf] %v1055
        %1152 = vst [vmem:[%s251 + $0x10] sm:$0xf] %v1056
        %1153 = vst [vmem:[%s251 + $0x14] sm:$0xf] %v1057
        %1154 = vst [vmem:[%s251 + $0x18] sm:$0xf] %v1058
        %1155 = vst [vmem:[%s251 + $0x1c] sm:$0xf] %v1059
        %1156 = vst [vmem:[%s251 + $0x20] sm:$0xf] %v1060
        %1157 = vst [vmem:[%s251 + $0x24] sm:$0xf] %v1061
        %1158 = vst [vmem:[%s251 + $0x28] sm:$0xf] %v1062
        %1159 = vst [vmem:[%s251 + $0x2c] sm:$0xf] %v1063
        %1160 = vst [vmem:[%s251 + $0x30] sm:$0xf] %v1064
        %1161 = vst [vmem:[%s251 + $0x34] sm:$0xf] %v1065
        %1162 = vst [vmem:[%s251 + $0x38] sm:$0xf] %v1066
        %1163 = vst [vmem:[%s251 + $0x3c] sm:$0xf] %v1067
        %1164 = vst [vmem:[%s251 + $0x40] sm:$0xf] %v1068
        %1165 = vst [vmem:[%s251 + $0x44] sm:$0xf] %v1069
        %1166 = vst [vmem:[%s251 + $0x48] sm:$0xf] %v1070
        %1167 = vst [vmem:[%s251 + $0x4c] sm:$0xf] %v1071
        %1168 = vst [vmem:[%s251 + $0x50] sm:$0xf] %v1072
        %1169 = vst [vmem:[%s251 + $0x54] sm:$0xf] %v1073
        %1170 = vst [vmem:[%s251 + $0x58] sm:$0xf] %v1074
        %1171 = vst [vmem:[%s251 + $0x5c] sm:$0xf] %v1075
        %1172 = vst [vmem:[%s251 + $0x60] sm:$0xf] %v1076
        %1173 = vst [vmem:[%s251 + $0x64] sm:$0xf] %v1077
        %1174 = vst [vmem:[%s251 + $0x68] sm:$0xf] %v1078
        %1175 = vst [vmem:[%s251 + $0x6c] sm:$0xf] %v1079
        %1176 = vst [vmem:[%s251 + $0x70] sm:$0xf] %v1080
        %1177 = vst [vmem:[%s251 + $0x74] sm:$0xf] %v1081
        %1178 = vst [vmem:[%s251 + $0x78] sm:$0xf] %v1082
        %1179 = vst [vmem:[%s251 + $0x7c] sm:$0xf] %v1083
        %1180 = vst [vmem:[%s251 + $0x80] sm:$0xf] %v1084
        %1181 = vst [vmem:[%s251 + $0x84] sm:$0xf] %v1085
        %1182 = vst [vmem:[%s251 + $0x88] sm:$0xf] %v1086
        %1183 = vst [vmem:[%s251 + $0x8c] sm:$0xf] %v1087
        %1184 = vst [vmem:[%s251 + $0x90] sm:$0xf] %v1088
        %1185 = vst [vmem:[%s251 + $0x94] sm:$0xf] %v1089
        %1186 = vst [vmem:[%s251 + $0x98] sm:$0xf] %v1090
        %1187 = vst [vmem:[%s251 + $0x9c] sm:$0xf] %v1091
        %1188 = vst [vmem:[%s251 + $0xa0] sm:$0xf] %v1092
        %1189 = vst [vmem:[%s251 + $0xa4] sm:$0xf] %v1093
        %1190 = vst [vmem:[%s251 + $0xa8] sm:$0xf] %v1094
        %1191 = vst [vmem:[%s251 + $0xac] sm:$0xf] %v1095
        %1192 = vst [vmem:[%s251 + $0xb0] sm:$0xf] %v1096
        %1193 = vst [vmem:[%s251 + $0xb4] sm:$0xf] %v1097
        %1194 = vst [vmem:[%s251 + $0xb8] sm:$0xf] %v1098
        %1195 = vst [vmem:[%s251 + $0xbc] sm:$0xf] %v1099
        %s1196 = sand.u32 %s132, 1
        %s1197 = scalar_lea.sflag [#allocation4], %s1196
        %s1198 = sand.u32 %s132, 1
        %s1199 = smul.addr %s1198, 192
        %s1200 = scalar_lea.vmem [#allocation7], %s1199
        // Predicated region
        $region41: #{tpu_custom_call.1} parent=31 // pred_check
          %p1201 = pneg %p142
        $region42: #{tpu_custom_call.1} parent=31 // pred_check_branch
          %1203 = sbr.rel (%p1201) target = $region44
        $region43: #{tpu_custom_call.1} parent=31 // pred_region
          %s1204 = smul.u32 48, %s26
          %s1206 = ssub.s32 3072, 3072
          %1207 = vsyncadd %s1197, %s1206
          %s1208 = sadd.s32 %s27, %s1204
          %s1209 = smul.addr %s1208, 64
          %s1210 = scalar_lea.hbm %s3, %s1209
          %s1211 = sshll.u32 %s1200, 4
          %s1212 = int_to_ptr.vmem [resolvable:$true] %s1211
          %1217 = dma.vmem_to_hbm [thread:$0]  %s1212, 3072, %s1210, %s1197, 64, 64, 4
        $region44: #{tpu_custom_call.1} parent=31 // pred_fallthru
          _
      $region32: #{tpu_custom_call.1} parent=5 // pred_fallthru
        _
      %p1218 = scmp.le.s32.totalorder 2, %s16
      // Predicated region
      $region45: #{tpu_custom_call.1} parent=5 // pred_check
        %p1219 = pneg %p1218
      $region46: #{tpu_custom_call.1} parent=5 // pred_check_branch
        %1221 = sbr.rel (%p1219) target = $region48
      $region47: #{tpu_custom_call.1} parent=5 // pred_region
        %s1222 = ssub.s32 %s16, 2
        // Predicated region
        $region49: #{tpu_custom_call.1} parent=47 // pred_check
          %p1223 = pneg %p148
        $region50: #{tpu_custom_call.1} parent=47 // pred_check_branch
          %1225 = sbr.rel (%p1223) target = $region52
        $region51: #{tpu_custom_call.1} parent=47 // pred_region
          %s1226 = sand.u32 %s133, 1
          %s1227 = scalar_lea.sflag [#allocation4], %s1226
          %s1228 = sand.u32 %s133, 1
          %s1229 = smul.addr %s1228, 192
          %s1230 = scalar_lea.vmem [#allocation7], %s1229
          %1231 = dma.done %s1227, 3072
        $region52: #{tpu_custom_call.1} parent=47 // pred_fallthru
          _
      $region48: #{tpu_custom_call.1} parent=5 // pred_fallthru
        _
    $region6: #{tpu_custom_call.1} parent=1 // loop_footer
      %s20 = sadd.s32 1, %s16
    $region7: #{tpu_custom_call.1} parent=1 // loop_footer_branch
      %15 = sbr.rel target = $region3
    $region8: #{tpu_custom_call.1} parent=1 // loop_exit
      _
    %1232 = vsyncpa [#allocation3], 1
    %s1233 = scalar_lea.sflag [#allocation3], 1
    %1234 = vsyncpa %s1233, 1
    %1235 = vsyncpa [#allocation6], 1
    %1236 = vsyncpa [#allocation4], 1
    %s1237 = scalar_lea.sflag [#allocation4], 1
    %1238 = vsyncpa %s1237, 1

</llo_original>
